<compile_context>
chip_gen: v5e
topology: v5e:2x2
jax: 0.10.0
libtpu: 0.0.40
codegen_flags: <defaults>
</compile_context>

<pallas_src>
import jax
import jax.numpy as jnp
from jax.experimental import pallas as pl
from jax.experimental.pallas import tpu as pltpu


def _weight_predictor_kernel(feat_ref, w_ref, b_ref, red_ref, probs_ref, out_ref):
    # ---- Linear: [TB, H] @ [H, P*C] on the MXU; bias broadcast-add on VPU ----
    logits = jnp.dot(feat_ref[...], w_ref[...],
                     preferred_element_type=jnp.float32) + b_ref[...]   # [TB, P*C]

    # ---- sigmoid (EUP slot, overlaps with everything else) ----
    nw = jax.nn.sigmoid(logits)                                         # [TB, P*C]

    # ---- (probs * weight).sum over partitions ----
    # probs is pre-flattened to [TB, P*C] in the same (p*C + c) layout as `nw`,
    # so the product is one full-vreg VPU multiply; the partition reduction is
    # one MXU dot against the stacked-identity matrix red[P*C, C].
    prod = probs_ref[...] * nw                                          # [TB, P*C]
    acc = jnp.dot(prod, red_ref[...],
                  preferred_element_type=jnp.float32)                   # [TB, C]

    # ---- log-normalization: acc - log(sum(exp(acc), -1) + 1e-20) ----
    # Max-subtracted form; the eps term is scaled by exp(-m) so this equals the
    # un-shifted torch expression exactly while staying f32-safe.
    m = jnp.max(acc, axis=1, keepdims=True)
    norm = m + jnp.log(jnp.sum(jnp.exp(acc - m), axis=1, keepdims=True)
                       + 1e-20 * jnp.exp(-m))
    out_ref[...] = (acc - norm).astype(out_ref.dtype)


def _pick_batch_tile(B, max_tile=256):
    """Largest sublane-aligned tile that divides B; full B otherwise."""
    for tb in (256, 128, 64, 32, 16, 8):
        if tb <= max_tile and B % tb == 0:
            return tb
    return B  # block == full array dim along sublanes is always legal


def weight_predictor_from_feature(feature, probs, weight, bias,
                                  num_classes, num_partitions,
                                  max_block_b=256):
    """feature: [B, H] f32; probs: [B, P, C] f32;
       weight: [H, P*C] f32 (transposed from torch's [P*C, H]); bias: [1, P*C].
       Returns [B, C] f32."""
    B, H = feature.shape
    P, C = num_partitions, num_classes
    assert probs.shape == (B, P, C)
    assert weight.shape == (H, P * C)
    assert bias.shape == (1, P * C)

    tb = _pick_batch_tile(B, max_block_b)
    grid = (B // tb,) if B % tb == 0 else (1,)

    # Lane-dense probs with the same flat layout (p*C + c) as the linear output.
    probs_flat = probs.reshape(B, P * C)                         # [B, P*C]

    # Stacked-identity reduction matrix: row p*C + c has a 1 at column c,
    # so prod @ red sums over partitions per class.  Resident across the grid.
    red = jnp.tile(jnp.eye(C, dtype=jnp.float32), (P, 1))        # [P*C, C]

    return pl.pallas_call(
        _weight_predictor_kernel,
        out_shape=jax.ShapeDtypeStruct((B, C), jnp.float32),
        grid=grid,
        in_specs=[
            pl.BlockSpec((tb, H), lambda i: (i, 0)),             # feature (batch-tiled)
            pl.BlockSpec((H, P * C), lambda i: (0, 0)),          # weight  (resident)
            pl.BlockSpec((1, P * C), lambda i: (0, 0)),          # bias    (resident)
            pl.BlockSpec((P * C, C), lambda i: (0, 0)),          # reduction matrix
            pl.BlockSpec((tb, P * C), lambda i: (i, 0)),         # probs   (batch-tiled)
        ],
        out_specs=pl.BlockSpec((tb, C), lambda i: (i, 0)),
        compiler_params=pltpu.CompilerParams(
            dimension_semantics=("parallel",),   # megacore: split batch on v7x
        ),
    )(feature, weight, bias, red, probs_flat)


def _reference(feature, probs, weight, bias, num_classes, num_partitions):
    B = feature.shape[0]
    logits = feature @ weight + bias                              # [B, P*C]
    nw = jax.nn.sigmoid(logits).reshape(B, num_partitions, num_classes)
    out = jnp.sum(probs * nw, axis=1)                             # [B, C]
    norm = jnp.log(jnp.sum(jnp.exp(out), axis=1, keepdims=True) + 1e-20)
    return out - norm


if __name__ == "__main__":
    # Small, module-consistent shapes.
    B = 16           # batch
    H = 32           # hidden_dim
    C = 16           # num_classes
    P = 4            # num_partitions

    key = jax.random.PRNGKey(0)
    kf, kp, kw, kb = jax.random.split(key, 4)

    feature = jax.random.normal(kf, (B, H), dtype=jnp.float32)
    probs = jax.nn.softmax(
        jax.random.normal(kp, (B, P, C), dtype=jnp.float32), axis=-1)

    # nn.Linear(hidden_dim, C*P)-shaped params, stored transposed to [H, P*C].
    bound = 1.0 / jnp.sqrt(H)
    weight = jax.random.uniform(kw, (H, P * C), jnp.float32, -bound, bound)
    bias = jax.random.uniform(kb, (1, P * C), jnp.float32, -bound, bound)

    out = weight_predictor_from_feature(feature, probs, weight, bias, C, P)
    out = jax.block_until_ready(out)

    ref = _reference(feature, probs, weight, bias, C, P)
    assert out.shape == (B, C)
    assert jnp.allclose(out, ref, atol=1e-5, rtol=1e-5), (
        f"max abs err {jnp.max(jnp.abs(out - ref))}")

    print("KERNEL_OK")
</pallas_src>

<mosaic_0001>
module attributes {stable_mosaic.version = 11 : i64} {
  func.func @_weight_predictor_kernel(%arg0: i32, %arg1: memref<16x32xf32, #tpu.memory_space<vmem>>, %arg2: memref<32x64xf32, #tpu.memory_space<vmem>>, %arg3: memref<1x64xf32, #tpu.memory_space<vmem>>, %arg4: memref<64x16xf32, #tpu.memory_space<vmem>>, %arg5: memref<16x64xf32, #tpu.memory_space<vmem>>, %arg6: memref<16x16xf32, #tpu.memory_space<vmem>>) attributes {dimension_semantics = [#tpu.dimension_semantics<parallel>], iteration_bounds = array<i64: 1>, scalar_prefetch = 0 : i64, scratch_operands = 0 : i64, tpu.core_type = #tpu.core_type<tc>, window_params = [{transform_indices = @transform_0, window_bounds = array<i64: 16, 32>}, {pipeline_mode = #tpu.pipeline_mode<synchronous>, transform_indices = @transform_1, window_bounds = array<i64: 32, 64>}, {pipeline_mode = #tpu.pipeline_mode<synchronous>, transform_indices = @transform_2, window_bounds = array<i64: 1, 64>}, {pipeline_mode = #tpu.pipeline_mode<synchronous>, transform_indices = @transform_3, window_bounds = array<i64: 64, 16>}, {transform_indices = @transform_4, window_bounds = array<i64: 16, 64>}, {transform_indices = @transform_5, window_bounds = array<i64: 16, 16>}]} {
    %c0 = arith.constant 0 : index
    %c0_0 = arith.constant 0 : index
    %0 = vector.load %arg1[%c0, %c0_0] : memref<16x32xf32, #tpu.memory_space<vmem>>, vector<16x32xf32>
    %c0_1 = arith.constant 0 : index
    %c0_2 = arith.constant 0 : index
    %1 = vector.load %arg2[%c0_1, %c0_2] : memref<32x64xf32, #tpu.memory_space<vmem>>, vector<32x64xf32>
    %cst = arith.constant dense<0.000000e+00> : vector<16x64xf32>
    %2 = tpu.matmul %0, %1, %cst {dimension_numbers = #tpu.dot_dimension_numbers<[1], [0], [0], [1], [0, 0, 1, 1], [], []>} : vector<16x32xf32>, vector<32x64xf32>, vector<16x64xf32> -> vector<16x64xf32>
    %c0_3 = arith.constant 0 : index
    %c0_4 = arith.constant 0 : index
    %3 = vector.load %arg3[%c0_3, %c0_4] : memref<1x64xf32, #tpu.memory_space<vmem>>, vector<1x64xf32>
    %4 = vector.broadcast %3 : vector<1x64xf32> to vector<16x64xf32>
    %5 = arith.addf %2, %4 : vector<16x64xf32>
    %6 = arith.negf %5 : vector<16x64xf32>
    %7 = math.exp %6 : vector<16x64xf32>
    %cst_5 = arith.constant 1.000000e+00 : f32
    %8 = vector.broadcast %cst_5 : f32 to vector<16x64xf32>
    %9 = arith.addf %8, %7 : vector<16x64xf32>
    %10 = arith.divf %8, %9 : vector<16x64xf32>
    %c0_6 = arith.constant 0 : index
    %c0_7 = arith.constant 0 : index
    %11 = vector.load %arg5[%c0_6, %c0_7] : memref<16x64xf32, #tpu.memory_space<vmem>>, vector<16x64xf32>
    %12 = arith.mulf %11, %10 : vector<16x64xf32>
    %c0_8 = arith.constant 0 : index
    %c0_9 = arith.constant 0 : index
    %13 = vector.load %arg4[%c0_8, %c0_9] : memref<64x16xf32, #tpu.memory_space<vmem>>, vector<64x16xf32>
    %cst_10 = arith.constant dense<0.000000e+00> : vector<16x16xf32>
    %14 = tpu.matmul %12, %13, %cst_10 {dimension_numbers = #tpu.dot_dimension_numbers<[1], [0], [0], [1], [0, 0, 1, 1], [], []>} : vector<16x64xf32>, vector<64x16xf32>, vector<16x16xf32> -> vector<16x16xf32>
    %cst_11 = arith.constant dense<0xFF800000> : vector<16xf32>
    %15 = vector.multi_reduction <maximumf>, %14, %cst_11 [1] : vector<16x16xf32> to vector<16xf32>
    %16 = vector.shape_cast %15 : vector<16xf32> to vector<16x1xf32>
    %17 = vector.broadcast %16 : vector<16x1xf32> to vector<16x16xf32>
    %18 = arith.subf %14, %17 : vector<16x16xf32>
    %19 = math.exp %18 : vector<16x16xf32>
    %cst_12 = arith.constant dense<0.000000e+00> : vector<16xf32>
    %20 = vector.multi_reduction <add>, %19, %cst_12 [1] : vector<16x16xf32> to vector<16xf32>
    %21 = vector.shape_cast %20 : vector<16xf32> to vector<16x1xf32>
    %cst_13 = arith.constant 0.000000e+00 : f32
    %22 = vector.broadcast %cst_13 : f32 to vector<16x1xf32>
    %23 = arith.subf %22, %16 : vector<16x1xf32>
    %24 = math.exp %23 : vector<16x1xf32>
    %cst_14 = arith.constant 9.99999968E-21 : f32
    %25 = vector.broadcast %cst_14 : f32 to vector<16x1xf32>
    %26 = arith.mulf %25, %24 : vector<16x1xf32>
    %27 = arith.addf %21, %26 : vector<16x1xf32>
    %28 = math.log %27 : vector<16x1xf32>
    %29 = arith.addf %16, %28 : vector<16x1xf32>
    %30 = vector.broadcast %29 : vector<16x1xf32> to vector<16x16xf32>
    %31 = arith.subf %14, %30 : vector<16x16xf32>
    %c0_15 = arith.constant 0 : index
    %c0_16 = arith.constant 0 : index
    %32 = vector.load %arg6[%c0_15, %c0_16] : memref<16x16xf32, #tpu.memory_space<vmem>>, vector<16x16xf32>
    tpu.vector_store %arg6[%c0_15, %c0_16], %31 {strides = array<i32>} : memref<16x16xf32, #tpu.memory_space<vmem>>, vector<16x16xf32>,
    return
  }
  func.func @transform_0(%arg0: i32) -> (i32, i32) {
    %c0_i32 = arith.constant 0 : i32
    %c0_i32_0 = arith.constant 0 : i32
    return %arg0, %c0_i32 : i32, i32
  }
  func.func @transform_1(%arg0: i32) -> (i32, i32) {
    %c0_i32 = arith.constant 0 : i32
    %c0_i32_0 = arith.constant 0 : i32
    %c0_i32_1 = arith.constant 0 : i32
    return %c0_i32, %c0_i32_0 : i32, i32
  }
  func.func @transform_2(%arg0: i32) -> (i32, i32) {
    %c0_i32 = arith.constant 0 : i32
    %c0_i32_0 = arith.constant 0 : i32
    %c0_i32_1 = arith.constant 0 : i32
    return %c0_i32, %c0_i32_0 : i32, i32
  }
  func.func @transform_3(%arg0: i32) -> (i32, i32) {
    %c0_i32 = arith.constant 0 : i32
    %c0_i32_0 = arith.constant 0 : i32
    %c0_i32_1 = arith.constant 0 : i32
    return %c0_i32, %c0_i32_0 : i32, i32
  }
  func.func @transform_4(%arg0: i32) -> (i32, i32) {
    %c0_i32 = arith.constant 0 : i32
    %c0_i32_0 = arith.constant 0 : i32
    return %arg0, %c0_i32 : i32, i32
  }
  func.func @transform_5(%arg0: i32) -> (i32, i32) {
    %c0_i32 = arith.constant 0 : i32
    %c0_i32_0 = arith.constant 0 : i32
    return %arg0, %c0_i32 : i32, i32
  }
}

</mosaic_0001>

<llo_original>
// kernel: tpu_custom_call.1
$region0: #{tpu_custom_call.1}
  #allocation0 [shape = 'u32[]', space=smem, size = 0x4, offset = 0x4, fixed_abs, tag = 'smem constant byte address 0x4 - core index']
  #allocation1 [shape = 'u32[72,128]{1,0:T(1,128)}', space=vmem, size = 0x9000, scoped, tag = 'internal scratch']
  %s0 = inlined_call_operand.vmem [shape: f32[16,32], index: 0, kind: input, shape index: {}]
  %s1 = inlined_call_operand.vmem [shape: f32[32,64], index: 1, kind: input, shape index: {}]
  %s2 = inlined_call_operand.vmem [shape: f32[1,64], index: 2, kind: input, shape index: {}]
  %s3 = inlined_call_operand.vmem [shape: f32[64,16], index: 3, kind: input, shape index: {}]
  %s4 = inlined_call_operand.vmem [shape: f32[16,64], index: 4, kind: input, shape index: {}]
  %s5 = inlined_call_operand.hbm [shape: f32[16,16], index: 5, kind: output, shape index: {}]
  %s6 = sld [smem:[#allocation0]]
  $region30: #{tpu_custom_call.1} parent=0
    _
  %s8 = ssub.s32 1, %s6
  %s9 = scalar_select 0, %s8, %s6
  $region1: #{tpu_custom_call.1} parent=0
    #allocation2 [shape = 'u8[8192]{0}', space=vmem, size = 0x2000, scoped, tag = 'output window, operand 0, single buffered']
    #allocation3 [shape = 's32[1]{0}', space=sflag, size = 0x4, scoped, tag = 'scoped memory for tpu_custom_call.1']
    %10 = vsyncpa [#allocation3], 0
    // Predicated region
    $region2: #{tpu_custom_call.1} parent=1 // pred_check
      _
    $region3: #{tpu_custom_call.1} parent=1 // pred_check_branch
      %12 = sbr.rel (0) target = $region5
    $region4: #{tpu_custom_call.1} parent=1 // pred_region
      _
    $region5: #{tpu_custom_call.1} parent=1 // pred_fallthru
      _
    // Predicated region
    $region6: #{tpu_custom_call.1} parent=1 // pred_check
      _
    $region7: #{tpu_custom_call.1} parent=1 // pred_check_branch
      %14 = sbr.rel (0) target = $region9
    $region8: #{tpu_custom_call.1} parent=1 // pred_region
      _
    $region9: #{tpu_custom_call.1} parent=1 // pred_fallthru
      _
    // Predicated region
    $region10: #{tpu_custom_call.1} parent=1 // pred_check
      _
    $region11: #{tpu_custom_call.1} parent=1 // pred_check_branch
      %16 = sbr.rel (0) target = $region13
    $region12: #{tpu_custom_call.1} parent=1 // pred_region
      _
    $region13: #{tpu_custom_call.1} parent=1 // pred_fallthru
      _
    // Predicated region
    $region14: #{tpu_custom_call.1} parent=1 // pred_check
      _
    $region15: #{tpu_custom_call.1} parent=1 // pred_check_branch
      %18 = sbr.rel (0) target = $region17
    $region16: #{tpu_custom_call.1} parent=1 // pred_region
      _
    $region17: #{tpu_custom_call.1} parent=1 // pred_fallthru
      _
    // Predicated region
    $region18: #{tpu_custom_call.1} parent=1 // pred_check
      _
    $region19: #{tpu_custom_call.1} parent=1 // pred_check_branch
      %20 = sbr.rel (0) target = $region21
    $region20: #{tpu_custom_call.1} parent=1 // pred_region
      _
    $region21: #{tpu_custom_call.1} parent=1 // pred_fallthru
      _
    %v21 = vld [vmem:[%s0] sm:$0xff]
    %v22 = vld [vmem:[%s0 + $0x8] sm:$0xff]
    %v23 = vld [vmem:[%s1] sm:$0xff]
    %v24 = vld [vmem:[%s1 + $0x8] sm:$0xff]
    %v25 = vld [vmem:[%s1 + $0x10] sm:$0xff]
    %v26 = vld [vmem:[%s1 + $0x18] sm:$0xff]
    %v27 = vld [vmem:[%s2] sm:$0x1]
    %v29 = vperm.slane %v27, 0
    %vm31 = vcmask 261120
    %v33 = vsel %vm31, %v21, 0
    %v36 = vsel %vm31, %v22, 0
    %38 = vmatpush.msra.mxu0 0.0
    %39 = vmatpush.msra.mxu0 0.0
    %40 = vmatpush.msra.mxu0 0.0
    %41 = vmatpush.msra.mxu0 0.0
    %42 = vmatpush.msra.mxu0 0.0
    %43 = vmatpush.msra.mxu0 0.0
    %44 = vmatpush.msra.mxu0 0.0
    %45 = vmatpush.msra.mxu0 0.0
    %46 = vmatpush.msra.mxu0 0.0
    %47 = vmatpush.msra.mxu0 0.0
    %48 = vmatpush.msra.mxu0 0.0
    %49 = vmatpush.msra.mxu0 0.0
    %50 = vmatpush.msra.mxu0 %v26
    %51 = vmatpush.msra.mxu0 %v25
    %52 = vmatpush.msra.mxu0 %v24
    %53 = vmatpush.msra.mxu0 %v23
    %54 = vmatmul.f32.gmra.mxu0 %v33
    %v55 = vpop.f32.mrf.mxu0
    %v56 = vadd.f32 %v29, %v55
    %57 = vmatmul.f32.gmra.mxu0 %v36
    %v58 = vpop.f32.mrf.mxu0
    %v59 = vadd.f32 %v29, %v58
    %60 = vdwg.mxu0
    %v61 = vxor.u32 %v56, 2147483648
    %v62 = vxor.u32 %v59, 2147483648
    %v63 = vmul.f32 %v61, 1.442695
    %v64 = vpow.pop %v63
    %v65 = vmul.f32 %v62, 1.442695
    %v66 = vpow.pop %v65
    %v67 = vadd.f32 %v64, 1.0
    %v68 = vadd.f32 %v66, 1.0
    %v69 = vrcp.pop %v67
    %v70 = vmul.f32 %v67, %v69
    %v71 = vsub.f32 1.0, %v70
    %v72 = vmul.f32 %v69, %v71
    %v73 = vadd.f32 %v69, %v72
    %vm74 = vweird.f32 %v67
    %vm75 = vweird.f32 %v69
    %vm76 = vmor %vm74, %vm75
    %v77 = vsel %vm76, %v69, %v73
    %v78 = vand.u32 2147483647, %v67
    %vm79 = vcmp.eq.f32.partialorder %v78, 8.507059e+37
    %v80 = vand.u32 %v67, 2147483648
    %v81 = vor.u32 1.1754944e-38, %v80
    %v82 = vsel %vm79, %v81, %v77
    %v83 = vmul.f32 1.0, %v82
    %v84 = vrcp.pop %v68
    %v85 = vmul.f32 %v68, %v84
    %v86 = vsub.f32 1.0, %v85
    %v87 = vmul.f32 %v84, %v86
    %v88 = vadd.f32 %v84, %v87
    %vm89 = vweird.f32 %v68
    %vm90 = vweird.f32 %v84
    %vm91 = vmor %vm89, %vm90
    %v92 = vsel %vm91, %v84, %v88
    %v93 = vand.u32 2147483647, %v68
    %vm94 = vcmp.eq.f32.partialorder %v93, 8.507059e+37
    %v95 = vand.u32 %v68, 2147483648
    %v96 = vor.u32 1.1754944e-38, %v95
    %v97 = vsel %vm94, %v96, %v92
    %v98 = vmul.f32 1.0, %v97
    %v99 = vld [vmem:[%s4] sm:$0xff]
    %v100 = vld [vmem:[%s4 + $0x8] sm:$0xff]
    %v101 = vmul.f32 %v99, %v83
    %v102 = vmul.f32 %v100, %v98
    %v103 = vld [vmem:[%s3] sm:$0xff]
    %v104 = vld [vmem:[%s3 + $0x8] sm:$0xff]
    %v105 = vld [vmem:[%s3 + $0x10] sm:$0xff]
    %v106 = vld [vmem:[%s3 + $0x18] sm:$0xff]
    %v107 = vld [vmem:[%s3 + $0x20] sm:$0xff]
    %v108 = vld [vmem:[%s3 + $0x28] sm:$0xff]
    %v109 = vld [vmem:[%s3 + $0x30] sm:$0xff]
    %v110 = vld [vmem:[%s3 + $0x38] sm:$0xff]
    %vm111 = vcmask 523264
    %v113 = vsel %vm111, %v101, 0
    %v116 = vsel %vm111, %v102, 0
    %118 = vmatpush.msra.mxu0 0.0
    %119 = vmatpush.msra.mxu0 0.0
    %120 = vmatpush.msra.mxu0 0.0
    %121 = vmatpush.msra.mxu0 0.0
    %122 = vmatpush.msra.mxu0 0.0
    %123 = vmatpush.msra.mxu0 0.0
    %124 = vmatpush.msra.mxu0 0.0
    %125 = vmatpush.msra.mxu0 0.0
    %126 = vmatpush.msra.mxu0 %v110
    %127 = vmatpush.msra.mxu0 %v109
    %128 = vmatpush.msra.mxu0 %v108
    %129 = vmatpush.msra.mxu0 %v107
    %130 = vmatpush.msra.mxu0 %v106
    %131 = vmatpush.msra.mxu0 %v105
    %132 = vmatpush.msra.mxu0 %v104
    %133 = vmatpush.msra.mxu0 %v103
    %134 = vmatmul.f32.gmra.mxu0 %v113
    %v135 = vpop.f32.mrf.mxu0
    %v136 = vadd.f32 0.0, %v135
    %137 = vmatmul.f32.gmra.mxu0 %v116
    %v138 = vpop.f32.mrf.mxu0
    %v139 = vadd.f32 0.0, %v138
    %140 = vdwg.mxu0
    %vm141 = vcmask 130048
    %v142 = vsel %vm141, %v136, -inf
    %143 = vmax.xlane.f32.xlu0 %v142
    %v144 = vpop.xlane.xlu0 %143
    %v145 = vsel %vm141, %v139, -inf
    %146 = vmax.xlane.f32.xlu0 %v145
    %v147 = vpop.xlane.xlu0 %146
    %v148 = vsub.f32 %v136, %v144
    %v149 = vsub.f32 %v139, %v147
    %v150 = vmul.f32 %v148, 1.442695
    %v151 = vpow.pop %v150
    %v152 = vmul.f32 %v149, 1.442695
    %v153 = vpow.pop %v152
    %v154 = vsel %vm141, %v151, 0.0
    %155 = vadd.xlane.f32.xlu0 %v154
    %v156 = vpop.xlane.xlu0 %155
    %v157 = vsel %vm141, %v153, 0.0
    %158 = vadd.xlane.f32.xlu0 %v157
    %v159 = vpop.xlane.xlu0 %158
    %v160 = vsub.f32 0.0, %v144
    %v161 = vsub.f32 0.0, %v147
    %v162 = vmul.f32 %v160, 1.442695
    %v163 = vpow.pop %v162
    %v164 = vmul.f32 %v161, 1.442695
    %v165 = vpow.pop %v164
    %v166 = vmul.f32 %v163, 1e-20
    %v167 = vmul.f32 %v165, 1e-20
    %v168 = vadd.f32 %v156, %v166
    %v169 = vadd.f32 %v159, %v167
    %v170 = vlog2.pop %v168
    %v171 = vmul.f32 %v170, 0.6931472
    %v172 = vlog2.pop %v169
    %v173 = vmul.f32 %v172, 0.6931472
    %v174 = vadd.f32 %v144, %v171
    %v175 = vadd.f32 %v147, %v173
    %v176 = vsub.f32 %v136, %v174
    %v177 = vsub.f32 %v139, %v175
    %178 = vst.msk [vmem:[#allocation2] sm:$0xff] %vm141, %v176
    %179 = vst.msk [vmem:[#allocation2 + $0x8] sm:$0xff] %vm141, %v177
    // Predicated region
    $region22: #{tpu_custom_call.1} parent=1 // pred_check
      _
    $region23: #{tpu_custom_call.1} parent=1 // pred_check_branch
      %181 = sbr.rel (0) target = $region25
    $region24: #{tpu_custom_call.1} parent=1 // pred_region
      %183 = vsyncadd [#allocation3], 0
      %s184 = sshll.u32 [#allocation2], 4
      %s185 = int_to_ptr.vmem [resolvable:$true] %s184
      %s186 = sshll.u32 %s5, 4
      %s187 = int_to_ptr.hbm [resolvable:$true] %s186
      %192 = dma.vmem_to_hbm [thread:$0]  %s185, 256, %s187, [#allocation3], 128, 128, 8
    $region25: #{tpu_custom_call.1} parent=1 // pred_fallthru
      _
    // Predicated region
    $region26: #{tpu_custom_call.1} parent=1 // pred_check
      _
    $region27: #{tpu_custom_call.1} parent=1 // pred_check_branch
      %194 = sbr.rel (0) target = $region29
    $region28: #{tpu_custom_call.1} parent=1 // pred_region
      %196 = dma.done [#allocation3], 256
    $region29: #{tpu_custom_call.1} parent=1 // pred_fallthru
      _
    %197 = vsyncpa [#allocation3], 1

</llo_original>
